<compile_context>
chip_gen: v5e
topology: v5e:2x2
jax: 0.10.0
libtpu: 0.0.40
codegen_flags: <defaults>
</compile_context>

<pallas_src>
import functools

import numpy as np
import jax
import jax.numpy as jnp
from jax.experimental import pallas as pl
from jax.experimental.pallas import tpu as pltpu


# ----------------------------------------------------------------------------
# Pallas kernel: whole DCRNN_hidden forward in one invocation.
# ----------------------------------------------------------------------------
def dcrnn_hidden_kernel(K, F_out,
                        s0_ref,     # (N, C)        [X | H], compute dtype
                        h_ref,      # (N, F_out)    H, compute dtype
                        mo_ref,     # (N, N)        out-diffusion operator
                        mi_ref,     # (N, N)        in-diffusion operator
                        w_zrh_ref,  # (2K-1, C, 3*F_out)  per-term [Wz | Wr | Wh_xpart]
                        b_zrh_ref,  # (1, 3*F_out)  f32     [bz | br | bh]
                        w_hu_ref,   # (2K-1, F_out, F_out)  per-term Wh for the H*r part
                        out_ref):   # (N, F_out)    f32
    s0 = s0_ref[...]
    h = h_ref[...]
    mo = mo_ref[...]
    mi = mi_ref[...]
    cdt = s0.dtype

    def mxu(a, b):
        return jnp.dot(a, b, preferred_element_type=jnp.float32)

    def diffuse_and_apply(s, w_ref, acc):
        # Diffusion recursion fused with the per-term weight matmuls so that only
        # {s, t_o, t_i, acc} are live at any time (K is small + static, so the
        # Python loop fully unrolls and the LLO scheduler sees the whole chain).
        # NOTE: faithfully replicates the reference module's recursion in which
        # Tx_0 is never updated (it is always the ORIGINAL input), i.e. this is
        # intentionally NOT a true Chebyshev recurrence -- do not "fix" it.
        acc = acc + mxu(s, w_ref[0])
        if K > 1:
            t_o = mxu(mo, s).astype(cdt)
            t_i = mxu(mi, s).astype(cdt)
            acc = acc + mxu(t_o, w_ref[1]) + mxu(t_i, w_ref[2])
            for k in range(2, K):
                t_o = (2.0 * mxu(mo, t_o)).astype(cdt) - s
                t_i = (2.0 * mxu(mi, t_i)).astype(cdt) - s
                acc = acc + mxu(t_o, w_ref[2 * k - 1]) + mxu(t_i, w_ref[2 * k])
        return acc

    # The z-gate, the r-gate and the X-part of the candidate gate all consume the
    # same diffusion sequence of S0 = [X | H]; their weight slabs are stacked so
    # each term does a single 96-lane-wide matmul (one fused accumulator).
    acc_zrh = diffuse_and_apply(s0, w_zrh_ref, b_zrh_ref[...])
    z = jax.nn.sigmoid(acc_zrh[:, :F_out])                       # EUP
    r = jax.nn.sigmoid(acc_zrh[:, F_out:2 * F_out])              # EUP

    # Only the (H * r) part of the candidate gate needs a fresh diffusion pass.
    u = (h.astype(jnp.float32) * r).astype(cdt)
    acc_h = diffuse_and_apply(u, w_hu_ref, acc_zrh[:, 2 * F_out:])
    h_tilde = jnp.tanh(acc_h)                                    # EUP

    h32 = h.astype(jnp.float32)
    out_ref[...] = (z * h_tilde + (1.0 - z) * h32).astype(out_ref.dtype)


def dcrnn_hidden_forward(X, H, M_out, M_in, gate_params, K,
                         compute_dtype=jnp.float32):
    """Runs the DCRNN_hidden forward pass in one Pallas kernel.

    gate_params = ((Wz, bz), (Wr, br), (Wh, bh)) with W: (2, K, C, F_out) and
    b: (F_out,), exactly the reference module's parameter shapes.
    """
    N, F_in = X.shape
    F_out = H.shape[1]
    C = F_in + F_out
    (Wz, bz), (Wr, br), (Wh, bh) = gate_params

    def per_term_slabs(W):
        # Diffusion-term order: [T0, T1_out, T1_in, T2_out, T2_in, ...]
        blocks = [W[0, 0] + W[1, 0]]
        for k in range(1, K):
            blocks.append(W[0, k])
            blocks.append(W[1, k])
        return jnp.stack(blocks, axis=0)                      # (2K-1, C, F_out)

    Wz_t = per_term_slabs(Wz)
    Wr_t = per_term_slabs(Wr)
    Wh_t = per_term_slabs(Wh)
    # Candidate gate split by linearity of the diffusion in the feature columns:
    #   X-part (rows :F_in) rides along with the shared [X|H] sequence (H-rows
    #   zeroed), the H*r part (rows F_in:) gets its own diffusion pass.
    Wh_x_t = Wh_t.at[:, F_in:, :].set(0.0)                    # (2K-1, C, F_out)
    Wh_u_t = Wh_t[:, F_in:, :]                                # (2K-1, F_out, F_out)

    W_zrh = jnp.concatenate([Wz_t, Wr_t, Wh_x_t], axis=-1)    # (2K-1, C, 3*F_out)
    b_zrh = jnp.concatenate([bz, br, bh])[None, :]            # (1, 3*F_out)

    S0 = jnp.concatenate([X, H], axis=-1)                     # (N, C) -- host-side concat

    cd = compute_dtype
    args = (S0.astype(cd), H.astype(cd), M_out.astype(cd), M_in.astype(cd),
            W_zrh.astype(cd), b_zrh.astype(jnp.float32), Wh_u_t.astype(cd))

    # Rough VMEM budget (inputs + output + live intermediates), with headroom.
    est_bytes = sum(int(np.prod(a.shape)) * a.dtype.itemsize for a in args)
    est_bytes += N * F_out * 4
    est_bytes += 6 * N * max(C, 3 * F_out) * 4
    vmem_limit = int(min(max(2 * est_bytes, 32 * 1024 * 1024), 100 * 1024 * 1024))

    vmem = pl.BlockSpec(memory_space=pltpu.MemorySpace.VMEM)
    return pl.pallas_call(
        functools.partial(dcrnn_hidden_kernel, K, F_out),
        out_shape=jax.ShapeDtypeStruct((N, F_out), jnp.float32),
        in_specs=[vmem] * len(args),
        out_specs=vmem,
        compiler_params=pltpu.CompilerParams(vmem_limit_bytes=vmem_limit),
    )(*args)


# ----------------------------------------------------------------------------
# Plain-JAX reference (unfused, mirrors the torch module op-for-op) for checks.
# ----------------------------------------------------------------------------
def _dconv_ref(S, W, b, mo, mi, K):
    hp = jax.lax.Precision.HIGHEST
    dot = lambda a, c: jnp.dot(a, c, precision=hp)
    H = dot(S, W[0, 0]) + dot(S, W[1, 0])
    if K > 1:
        t_o = dot(mo, S)
        t_i = dot(mi, S)
        H = H + dot(t_o, W[0, 1]) + dot(t_i, W[1, 1])
        for k in range(2, K):
            # Tx_0 is never updated in the reference module (always X).
            t_o = 2.0 * dot(mo, t_o) - S
            t_i = 2.0 * dot(mi, t_i) - S
            H = H + dot(t_o, W[0, k]) + dot(t_i, W[1, k])
    return H + b


def dcrnn_hidden_ref(X, H, M_out, M_in, gate_params, K):
    (Wz, bz), (Wr, br), (Wh, bh) = gate_params
    S = jnp.concatenate([X, H], axis=-1)
    Z = jax.nn.sigmoid(_dconv_ref(S, Wz, bz, M_out, M_in, K))
    R = jax.nn.sigmoid(_dconv_ref(S, Wr, br, M_out, M_in, K))
    Sh = jnp.concatenate([X, H * R], axis=-1)
    Ht = jnp.tanh(_dconv_ref(Sh, Wh, bh, M_out, M_in, K))
    return Z * Ht + (1.0 - Z) * H


# ----------------------------------------------------------------------------
# Glue: graph preprocessing (to_dense_adj / degree reciprocals / dense_to_sparse
# of A^T / propagate scatter-adds) reproduced exactly with numpy into two dense
# (N, N) operators.
# ----------------------------------------------------------------------------
def build_propagation_operators(edge_index, edge_weight, N):
    row, col = np.asarray(edge_index[0]), np.asarray(edge_index[1])
    w = np.asarray(edge_weight, dtype=np.float64)

    # to_dense_adj (sums duplicate edges)
    A = np.zeros((N, N), dtype=np.float64)
    np.add.at(A, (row, col), w)

    deg_out = A.sum(axis=1)                 # adj @ ones
    deg_in = A.sum(axis=0)                  # ones @ adj
    if not (np.all(deg_out != 0.0) and np.all(deg_in != 0.0)):
        raise ValueError(
            "isolated node detected: the reference module would produce inf/NaN "
            "(torch.reciprocal of a zero degree); refusing to build operators")
    norm_out = (1.0 / deg_out)[row]
    norm_in = (1.0 / deg_in)[row]           # NB: indexed by the *original* row (module quirk)

    # forward propagate: out[col[e]] += norm_out[e] * x[row[e]]
    M_out = np.zeros((N, N), dtype=np.float64)
    np.add.at(M_out, (col, row), norm_out)

    # reverse edges: dense_to_sparse(A.T) -> nonzeros of A^T in row-major order.
    rr, rc = np.nonzero(A.T)
    if rr.shape[0] != row.shape[0]:
        raise ValueError(
            "nnz(A^T) != number of original edges (duplicates merged by "
            "to_dense_adj); the reference module's positional norm_in indexing "
            "is ill-defined in that case")
    # reverse propagate: out[rc[e']] += norm_in[e'] * x[rr[e']]
    M_in = np.zeros((N, N), dtype=np.float64)
    np.add.at(M_in, (rc, rr), norm_in)

    return (jnp.asarray(M_out, dtype=jnp.float32),
            jnp.asarray(M_in, dtype=jnp.float32))


def xavier_uniform(key, shape):
    # torch.nn.init.xavier_uniform_ on a (2, K, C, F_out) tensor
    fan_in = shape[1] * shape[2] * shape[3]
    fan_out = shape[0] * shape[2] * shape[3]
    bound = float(np.sqrt(6.0 / (fan_in + fan_out)))
    return jax.random.uniform(key, shape, jnp.float32, -bound, bound)


def make_dconv_params(key, in_ch, out_ch, K):
    W = xavier_uniform(key, (2, K, in_ch, out_ch))
    b = jnp.zeros((out_ch,), dtype=jnp.float32)
    return W, b


if __name__ == "__main__":
    # Small, module-consistent shapes.
    N = 16            # number of graph nodes
    F_IN = 4          # in_channels
    F_OUT = 32        # out_channels
    K = 3             # diffusion filter size

    key = jax.random.PRNGKey(0)
    k_x, k_h, k_w, k_z, k_r, k_g = jax.random.split(key, 6)

    # Node features.
    X = jax.random.normal(k_x, (N, F_IN), dtype=jnp.float32)

    # Complete directed graph with positive weights (all degrees nonzero).
    row = np.repeat(np.arange(N), N)
    col = np.tile(np.arange(N), N)
    edge_index = np.stack([row, col], axis=0)                       # (2, N*N)
    edge_weight = np.asarray(
        jax.random.uniform(k_w, (N * N,), jnp.float32, 0.5, 1.5))

    M_out, M_in = build_propagation_operators(edge_index, edge_weight, N)

    # Parameters of the three DConv gates (in_channels = F_IN + F_OUT each).
    C = F_IN + F_OUT
    params = (
        make_dconv_params(k_z, C, F_OUT, K),   # update gate
        make_dconv_params(k_r, C, F_OUT, K),   # reset gate
        make_dconv_params(k_g, C, F_OUT, K),   # candidate state
    )

    fwd = jax.jit(dcrnn_hidden_forward, static_argnums=(5, 6))

    # Case 1: H=None in the module -> zero initial hidden state.
    H0 = jnp.zeros((N, F_OUT), dtype=jnp.float32)
    out0 = jax.block_until_ready(fwd(X, H0, M_out, M_in, params, K, jnp.float32))
    ref0 = jax.block_until_ready(dcrnn_hidden_ref(X, H0, M_out, M_in, params, K))
    np.testing.assert_allclose(np.asarray(out0), np.asarray(ref0),
                               rtol=2e-3, atol=2e-3)

    # Case 2: nonzero hidden state (exercises the H / H*r paths and the blend).
    H1 = jax.random.normal(k_h, (N, F_OUT), dtype=jnp.float32)
    out1 = jax.block_until_ready(fwd(X, H1, M_out, M_in, params, K, jnp.float32))
    ref1 = jax.block_until_ready(dcrnn_hidden_ref(X, H1, M_out, M_in, params, K))
    np.testing.assert_allclose(np.asarray(out1), np.asarray(ref1),
                               rtol=2e-3, atol=2e-3)

    # Case 3: bf16 operators/activations/weights with f32 MXU accumulation
    # (native MXU-rate path on v6e/v7x); compared loosely against the f32 ref.
    out_bf = jax.block_until_ready(fwd(X, H1, M_out, M_in, params, K, jnp.bfloat16))
    np.testing.assert_allclose(np.asarray(out_bf), np.asarray(ref1),
                               rtol=5e-2, atol=5e-2)

    assert out0.shape == (N, F_OUT) and out1.shape == (N, F_OUT)
    print("KERNEL_OK")
</pallas_src>

<mosaic_0001>
module attributes {stable_mosaic.version = 11 : i64} {
  func.func @dcrnn_hidden_kernel(%arg0: memref<16x36xf32, #tpu.memory_space<vmem>>, %arg1: memref<16x32xf32, #tpu.memory_space<vmem>>, %arg2: memref<16x16xf32, #tpu.memory_space<vmem>>, %arg3: memref<16x16xf32, #tpu.memory_space<vmem>>, %arg4: memref<5x36x96xf32, #tpu.memory_space<vmem>>, %arg5: memref<1x96xf32, #tpu.memory_space<vmem>>, %arg6: memref<5x32x32xf32, #tpu.memory_space<vmem>>, %arg7: memref<16x32xf32, #tpu.memory_space<vmem>>) attributes {dimension_semantics = [], scalar_prefetch = 0 : i64, scratch_operands = 0 : i64, tpu.core_type = #tpu.core_type<tc>} {
    %c0 = arith.constant 0 : index
    %c0_0 = arith.constant 0 : index
    %0 = vector.load %arg0[%c0, %c0_0] : memref<16x36xf32, #tpu.memory_space<vmem>>, vector<16x36xf32>
    %c0_1 = arith.constant 0 : index
    %c0_2 = arith.constant 0 : index
    %1 = vector.load %arg1[%c0_1, %c0_2] : memref<16x32xf32, #tpu.memory_space<vmem>>, vector<16x32xf32>
    %c0_3 = arith.constant 0 : index
    %c0_4 = arith.constant 0 : index
    %2 = vector.load %arg2[%c0_3, %c0_4] : memref<16x16xf32, #tpu.memory_space<vmem>>, vector<16x16xf32>
    %c0_5 = arith.constant 0 : index
    %c0_6 = arith.constant 0 : index
    %3 = vector.load %arg3[%c0_5, %c0_6] : memref<16x16xf32, #tpu.memory_space<vmem>>, vector<16x16xf32>
    %c0_7 = arith.constant 0 : index
    %c0_8 = arith.constant 0 : index
    %4 = vector.load %arg5[%c0_7, %c0_8] : memref<1x96xf32, #tpu.memory_space<vmem>>, vector<1x96xf32>
    %c0_9 = arith.constant 0 : index
    %c0_10 = arith.constant 0 : index
    %c0_11 = arith.constant 0 : index
    %5 = vector.load %arg4[%c0_9, %c0_10, %c0_11] : memref<5x36x96xf32, #tpu.memory_space<vmem>>, vector<1x36x96xf32>
    %6 = vector.shape_cast %5 : vector<1x36x96xf32> to vector<36x96xf32>
    %cst = arith.constant dense<0.000000e+00> : vector<16x96xf32>
    %7 = tpu.matmul %0, %6, %cst {dimension_numbers = #tpu.dot_dimension_numbers<[1], [0], [0], [1], [0, 0, 1, 1], [], []>} : vector<16x36xf32>, vector<36x96xf32>, vector<16x96xf32> -> vector<16x96xf32>
    %8 = vector.broadcast %4 : vector<1x96xf32> to vector<16x96xf32>
    %9 = arith.addf %8, %7 : vector<16x96xf32>
    %cst_12 = arith.constant dense<0.000000e+00> : vector<16x36xf32>
    %10 = tpu.matmul %2, %0, %cst_12 {dimension_numbers = #tpu.dot_dimension_numbers<[1], [0], [0], [1], [0, 0, 1, 1], [], []>} : vector<16x16xf32>, vector<16x36xf32>, vector<16x36xf32> -> vector<16x36xf32>
    %cst_13 = arith.constant dense<0.000000e+00> : vector<16x36xf32>
    %11 = tpu.matmul %3, %0, %cst_13 {dimension_numbers = #tpu.dot_dimension_numbers<[1], [0], [0], [1], [0, 0, 1, 1], [], []>} : vector<16x16xf32>, vector<16x36xf32>, vector<16x36xf32> -> vector<16x36xf32>
    %c1 = arith.constant 1 : index
    %c0_14 = arith.constant 0 : index
    %c0_15 = arith.constant 0 : index
    %12 = vector.load %arg4[%c1, %c0_14, %c0_15] : memref<5x36x96xf32, #tpu.memory_space<vmem>>, vector<1x36x96xf32>
    %13 = vector.shape_cast %12 : vector<1x36x96xf32> to vector<36x96xf32>
    %cst_16 = arith.constant dense<0.000000e+00> : vector<16x96xf32>
    %14 = tpu.matmul %10, %13, %cst_16 {dimension_numbers = #tpu.dot_dimension_numbers<[1], [0], [0], [1], [0, 0, 1, 1], [], []>} : vector<16x36xf32>, vector<36x96xf32>, vector<16x96xf32> -> vector<16x96xf32>
    %15 = arith.addf %9, %14 : vector<16x96xf32>
    %c2 = arith.constant 2 : index
    %c0_17 = arith.constant 0 : index
    %c0_18 = arith.constant 0 : index
    %16 = vector.load %arg4[%c2, %c0_17, %c0_18] : memref<5x36x96xf32, #tpu.memory_space<vmem>>, vector<1x36x96xf32>
    %17 = vector.shape_cast %16 : vector<1x36x96xf32> to vector<36x96xf32>
    %cst_19 = arith.constant dense<0.000000e+00> : vector<16x96xf32>
    %18 = tpu.matmul %11, %17, %cst_19 {dimension_numbers = #tpu.dot_dimension_numbers<[1], [0], [0], [1], [0, 0, 1, 1], [], []>} : vector<16x36xf32>, vector<36x96xf32>, vector<16x96xf32> -> vector<16x96xf32>
    %19 = arith.addf %15, %18 : vector<16x96xf32>
    %cst_20 = arith.constant dense<0.000000e+00> : vector<16x36xf32>
    %20 = tpu.matmul %2, %10, %cst_20 {dimension_numbers = #tpu.dot_dimension_numbers<[1], [0], [0], [1], [0, 0, 1, 1], [], []>} : vector<16x16xf32>, vector<16x36xf32>, vector<16x36xf32> -> vector<16x36xf32>
    %cst_21 = arith.constant 2.000000e+00 : f32
    %21 = vector.broadcast %cst_21 : f32 to vector<16x36xf32>
    %22 = arith.mulf %21, %20 : vector<16x36xf32>
    %23 = arith.subf %22, %0 : vector<16x36xf32>
    %cst_22 = arith.constant dense<0.000000e+00> : vector<16x36xf32>
    %24 = tpu.matmul %3, %11, %cst_22 {dimension_numbers = #tpu.dot_dimension_numbers<[1], [0], [0], [1], [0, 0, 1, 1], [], []>} : vector<16x16xf32>, vector<16x36xf32>, vector<16x36xf32> -> vector<16x36xf32>
    %cst_23 = arith.constant 2.000000e+00 : f32
    %25 = vector.broadcast %cst_23 : f32 to vector<16x36xf32>
    %26 = arith.mulf %25, %24 : vector<16x36xf32>
    %27 = arith.subf %26, %0 : vector<16x36xf32>
    %c3 = arith.constant 3 : index
    %c0_24 = arith.constant 0 : index
    %c0_25 = arith.constant 0 : index
    %28 = vector.load %arg4[%c3, %c0_24, %c0_25] : memref<5x36x96xf32, #tpu.memory_space<vmem>>, vector<1x36x96xf32>
    %29 = vector.shape_cast %28 : vector<1x36x96xf32> to vector<36x96xf32>
    %cst_26 = arith.constant dense<0.000000e+00> : vector<16x96xf32>
    %30 = tpu.matmul %23, %29, %cst_26 {dimension_numbers = #tpu.dot_dimension_numbers<[1], [0], [0], [1], [0, 0, 1, 1], [], []>} : vector<16x36xf32>, vector<36x96xf32>, vector<16x96xf32> -> vector<16x96xf32>
    %31 = arith.addf %19, %30 : vector<16x96xf32>
    %c4 = arith.constant 4 : index
    %c0_27 = arith.constant 0 : index
    %c0_28 = arith.constant 0 : index
    %32 = vector.load %arg4[%c4, %c0_27, %c0_28] : memref<5x36x96xf32, #tpu.memory_space<vmem>>, vector<1x36x96xf32>
    %33 = vector.shape_cast %32 : vector<1x36x96xf32> to vector<36x96xf32>
    %cst_29 = arith.constant dense<0.000000e+00> : vector<16x96xf32>
    %34 = tpu.matmul %27, %33, %cst_29 {dimension_numbers = #tpu.dot_dimension_numbers<[1], [0], [0], [1], [0, 0, 1, 1], [], []>} : vector<16x36xf32>, vector<36x96xf32>, vector<16x96xf32> -> vector<16x96xf32>
    %35 = arith.addf %31, %34 : vector<16x96xf32>
    %36 = vector.extract_strided_slice %35 {offsets = [0, 0], sizes = [16, 32], strides = [1, 1]} : vector<16x96xf32> to vector<16x32xf32>
    %37 = arith.negf %36 : vector<16x32xf32>
    %38 = math.exp %37 : vector<16x32xf32>
    %cst_30 = arith.constant 1.000000e+00 : f32
    %39 = vector.broadcast %cst_30 : f32 to vector<16x32xf32>
    %40 = arith.addf %39, %38 : vector<16x32xf32>
    %41 = arith.divf %39, %40 : vector<16x32xf32>
    %42 = vector.extract_strided_slice %35 {offsets = [0, 32], sizes = [16, 32], strides = [1, 1]} : vector<16x96xf32> to vector<16x32xf32>
    %43 = arith.negf %42 : vector<16x32xf32>
    %44 = math.exp %43 : vector<16x32xf32>
    %cst_31 = arith.constant 1.000000e+00 : f32
    %45 = vector.broadcast %cst_31 : f32 to vector<16x32xf32>
    %46 = arith.addf %45, %44 : vector<16x32xf32>
    %47 = arith.divf %45, %46 : vector<16x32xf32>
    %48 = arith.mulf %1, %47 : vector<16x32xf32>
    %49 = vector.extract_strided_slice %35 {offsets = [0, 64], sizes = [16, 32], strides = [1, 1]} : vector<16x96xf32> to vector<16x32xf32>
    %c0_32 = arith.constant 0 : index
    %c0_33 = arith.constant 0 : index
    %c0_34 = arith.constant 0 : index
    %50 = vector.load %arg6[%c0_32, %c0_33, %c0_34] : memref<5x32x32xf32, #tpu.memory_space<vmem>>, vector<1x32x32xf32>
    %51 = vector.shape_cast %50 : vector<1x32x32xf32> to vector<32x32xf32>
    %cst_35 = arith.constant dense<0.000000e+00> : vector<16x32xf32>
    %52 = tpu.matmul %48, %51, %cst_35 {dimension_numbers = #tpu.dot_dimension_numbers<[1], [0], [0], [1], [0, 0, 1, 1], [], []>} : vector<16x32xf32>, vector<32x32xf32>, vector<16x32xf32> -> vector<16x32xf32>
    %53 = arith.addf %49, %52 : vector<16x32xf32>
    %cst_36 = arith.constant dense<0.000000e+00> : vector<16x32xf32>
    %54 = tpu.matmul %2, %48, %cst_36 {dimension_numbers = #tpu.dot_dimension_numbers<[1], [0], [0], [1], [0, 0, 1, 1], [], []>} : vector<16x16xf32>, vector<16x32xf32>, vector<16x32xf32> -> vector<16x32xf32>
    %cst_37 = arith.constant dense<0.000000e+00> : vector<16x32xf32>
    %55 = tpu.matmul %3, %48, %cst_37 {dimension_numbers = #tpu.dot_dimension_numbers<[1], [0], [0], [1], [0, 0, 1, 1], [], []>} : vector<16x16xf32>, vector<16x32xf32>, vector<16x32xf32> -> vector<16x32xf32>
    %c1_38 = arith.constant 1 : index
    %c0_39 = arith.constant 0 : index
    %c0_40 = arith.constant 0 : index
    %56 = vector.load %arg6[%c1_38, %c0_39, %c0_40] : memref<5x32x32xf32, #tpu.memory_space<vmem>>, vector<1x32x32xf32>
    %57 = vector.shape_cast %56 : vector<1x32x32xf32> to vector<32x32xf32>
    %cst_41 = arith.constant dense<0.000000e+00> : vector<16x32xf32>
    %58 = tpu.matmul %54, %57, %cst_41 {dimension_numbers = #tpu.dot_dimension_numbers<[1], [0], [0], [1], [0, 0, 1, 1], [], []>} : vector<16x32xf32>, vector<32x32xf32>, vector<16x32xf32> -> vector<16x32xf32>
    %59 = arith.addf %53, %58 : vector<16x32xf32>
    %c2_42 = arith.constant 2 : index
    %c0_43 = arith.constant 0 : index
    %c0_44 = arith.constant 0 : index
    %60 = vector.load %arg6[%c2_42, %c0_43, %c0_44] : memref<5x32x32xf32, #tpu.memory_space<vmem>>, vector<1x32x32xf32>
    %61 = vector.shape_cast %60 : vector<1x32x32xf32> to vector<32x32xf32>
    %cst_45 = arith.constant dense<0.000000e+00> : vector<16x32xf32>
    %62 = tpu.matmul %55, %61, %cst_45 {dimension_numbers = #tpu.dot_dimension_numbers<[1], [0], [0], [1], [0, 0, 1, 1], [], []>} : vector<16x32xf32>, vector<32x32xf32>, vector<16x32xf32> -> vector<16x32xf32>
    %63 = arith.addf %59, %62 : vector<16x32xf32>
    %cst_46 = arith.constant dense<0.000000e+00> : vector<16x32xf32>
    %64 = tpu.matmul %2, %54, %cst_46 {dimension_numbers = #tpu.dot_dimension_numbers<[1], [0], [0], [1], [0, 0, 1, 1], [], []>} : vector<16x16xf32>, vector<16x32xf32>, vector<16x32xf32> -> vector<16x32xf32>
    %cst_47 = arith.constant 2.000000e+00 : f32
    %65 = vector.broadcast %cst_47 : f32 to vector<16x32xf32>
    %66 = arith.mulf %65, %64 : vector<16x32xf32>
    %67 = arith.subf %66, %48 : vector<16x32xf32>
    %cst_48 = arith.constant dense<0.000000e+00> : vector<16x32xf32>
    %68 = tpu.matmul %3, %55, %cst_48 {dimension_numbers = #tpu.dot_dimension_numbers<[1], [0], [0], [1], [0, 0, 1, 1], [], []>} : vector<16x16xf32>, vector<16x32xf32>, vector<16x32xf32> -> vector<16x32xf32>
    %cst_49 = arith.constant 2.000000e+00 : f32
    %69 = vector.broadcast %cst_49 : f32 to vector<16x32xf32>
    %70 = arith.mulf %69, %68 : vector<16x32xf32>
    %71 = arith.subf %70, %48 : vector<16x32xf32>
    %c3_50 = arith.constant 3 : index
    %c0_51 = arith.constant 0 : index
    %c0_52 = arith.constant 0 : index
    %72 = vector.load %arg6[%c3_50, %c0_51, %c0_52] : memref<5x32x32xf32, #tpu.memory_space<vmem>>, vector<1x32x32xf32>
    %73 = vector.shape_cast %72 : vector<1x32x32xf32> to vector<32x32xf32>
    %cst_53 = arith.constant dense<0.000000e+00> : vector<16x32xf32>
    %74 = tpu.matmul %67, %73, %cst_53 {dimension_numbers = #tpu.dot_dimension_numbers<[1], [0], [0], [1], [0, 0, 1, 1], [], []>} : vector<16x32xf32>, vector<32x32xf32>, vector<16x32xf32> -> vector<16x32xf32>
    %75 = arith.addf %63, %74 : vector<16x32xf32>
    %c4_54 = arith.constant 4 : index
    %c0_55 = arith.constant 0 : index
    %c0_56 = arith.constant 0 : index
    %76 = vector.load %arg6[%c4_54, %c0_55, %c0_56] : memref<5x32x32xf32, #tpu.memory_space<vmem>>, vector<1x32x32xf32>
    %77 = vector.shape_cast %76 : vector<1x32x32xf32> to vector<32x32xf32>
    %cst_57 = arith.constant dense<0.000000e+00> : vector<16x32xf32>
    %78 = tpu.matmul %71, %77, %cst_57 {dimension_numbers = #tpu.dot_dimension_numbers<[1], [0], [0], [1], [0, 0, 1, 1], [], []>} : vector<16x32xf32>, vector<32x32xf32>, vector<16x32xf32> -> vector<16x32xf32>
    %79 = arith.addf %75, %78 : vector<16x32xf32>
    %80 = math.tanh %79 : vector<16x32xf32>
    %81 = arith.mulf %41, %80 : vector<16x32xf32>
    %cst_58 = arith.constant 1.000000e+00 : f32
    %82 = vector.broadcast %cst_58 : f32 to vector<16x32xf32>
    %83 = arith.subf %82, %41 : vector<16x32xf32>
    %84 = arith.mulf %83, %1 : vector<16x32xf32>
    %85 = arith.addf %81, %84 : vector<16x32xf32>
    %c0_59 = arith.constant 0 : index
    %c0_60 = arith.constant 0 : index
    %86 = vector.load %arg7[%c0_59, %c0_60] : memref<16x32xf32, #tpu.memory_space<vmem>>, vector<16x32xf32>
    tpu.vector_store %arg7[%c0_59, %c0_60], %85 {strides = array<i32>} : memref<16x32xf32, #tpu.memory_space<vmem>>, vector<16x32xf32>,
    return
  }
}

</mosaic_0001>

<llo_original>
// kernel: dcrnn_hidden_forward.1
$region0: #{dcrnn_hidden_forward.1}
  #allocation0 [shape = 'u32[]', space=smem, size = 0x4, offset = 0x4, fixed_abs, tag = 'smem constant byte address 0x4 - core index']
  #allocation1 [shape = 'u32[72,128]{1,0:T(1,128)}', space=vmem, size = 0x9000, scoped, tag = 'internal scratch']
  %s0 = inlined_call_operand.vmem [shape: f32[16,36], index: 0, kind: input, shape index: {}]
  %s1 = inlined_call_operand.vmem [shape: f32[16,32], index: 1, kind: input, shape index: {}]
  %s2 = inlined_call_operand.vmem [shape: f32[16,16], index: 2, kind: input, shape index: {}]
  %s3 = inlined_call_operand.vmem [shape: f32[16,16], index: 3, kind: input, shape index: {}]
  %s4 = inlined_call_operand.vmem [shape: f32[5,36,96], index: 4, kind: input, shape index: {}]
  %s5 = inlined_call_operand.vmem [shape: f32[1,96], index: 5, kind: input, shape index: {}]
  %s6 = inlined_call_operand.vmem [shape: f32[5,32,32], index: 6, kind: input, shape index: {}]
  %s7 = inlined_call_operand.hbm [shape: f32[16,32], index: 7, kind: output, shape index: {}]
  %s8 = sld [smem:[#allocation0]]
  $region38: #{dcrnn_hidden_forward.1} parent=0
    _
  %s10 = ssub.s32 1, %s8
  %s11 = scalar_select 0, %s10, %s8
  $region1: #{dcrnn_hidden_forward.1} parent=0
    #allocation2 [shape = 'u8[8192]{0}', space=vmem, size = 0x2000, scoped, tag = 'output window, operand 0, single buffered']
    #allocation3 [shape = 's32[1]{0}', space=sflag, size = 0x4, scoped, tag = 'scoped memory for dcrnn_hidden_forward.1']
    %12 = vsyncpa [#allocation3], 0
    // Predicated region
    $region2: #{dcrnn_hidden_forward.1} parent=1 // pred_check
      _
    $region3: #{dcrnn_hidden_forward.1} parent=1 // pred_check_branch
      %14 = sbr.rel (0) target = $region5
    $region4: #{dcrnn_hidden_forward.1} parent=1 // pred_region
      _
    $region5: #{dcrnn_hidden_forward.1} parent=1 // pred_fallthru
      _
    // Predicated region
    $region6: #{dcrnn_hidden_forward.1} parent=1 // pred_check
      _
    $region7: #{dcrnn_hidden_forward.1} parent=1 // pred_check_branch
      %16 = sbr.rel (0) target = $region9
    $region8: #{dcrnn_hidden_forward.1} parent=1 // pred_region
      _
    $region9: #{dcrnn_hidden_forward.1} parent=1 // pred_fallthru
      _
    // Predicated region
    $region10: #{dcrnn_hidden_forward.1} parent=1 // pred_check
      _
    $region11: #{dcrnn_hidden_forward.1} parent=1 // pred_check_branch
      %18 = sbr.rel (0) target = $region13
    $region12: #{dcrnn_hidden_forward.1} parent=1 // pred_region
      _
    $region13: #{dcrnn_hidden_forward.1} parent=1 // pred_fallthru
      _
    // Predicated region
    $region14: #{dcrnn_hidden_forward.1} parent=1 // pred_check
      _
    $region15: #{dcrnn_hidden_forward.1} parent=1 // pred_check_branch
      %20 = sbr.rel (0) target = $region17
    $region16: #{dcrnn_hidden_forward.1} parent=1 // pred_region
      _
    $region17: #{dcrnn_hidden_forward.1} parent=1 // pred_fallthru
      _
    // Predicated region
    $region18: #{dcrnn_hidden_forward.1} parent=1 // pred_check
      _
    $region19: #{dcrnn_hidden_forward.1} parent=1 // pred_check_branch
      %22 = sbr.rel (0) target = $region21
    $region20: #{dcrnn_hidden_forward.1} parent=1 // pred_region
      _
    $region21: #{dcrnn_hidden_forward.1} parent=1 // pred_fallthru
      _
    // Predicated region
    $region22: #{dcrnn_hidden_forward.1} parent=1 // pred_check
      _
    $region23: #{dcrnn_hidden_forward.1} parent=1 // pred_check_branch
      %24 = sbr.rel (0) target = $region25
    $region24: #{dcrnn_hidden_forward.1} parent=1 // pred_region
      _
    $region25: #{dcrnn_hidden_forward.1} parent=1 // pred_fallthru
      _
    // Predicated region
    $region26: #{dcrnn_hidden_forward.1} parent=1 // pred_check
      _
    $region27: #{dcrnn_hidden_forward.1} parent=1 // pred_check_branch
      %26 = sbr.rel (0) target = $region29
    $region28: #{dcrnn_hidden_forward.1} parent=1 // pred_region
      _
    $region29: #{dcrnn_hidden_forward.1} parent=1 // pred_fallthru
      _
    %v27 = vld [vmem:[%s0] sm:$0xff]
    %v28 = vld [vmem:[%s0 + $0x8] sm:$0xff]
    %v29 = vld [vmem:[%s1] sm:$0xff]
    %v30 = vld [vmem:[%s1 + $0x8] sm:$0xff]
    %v31 = vld [vmem:[%s2] sm:$0xff]
    %v32 = vld [vmem:[%s2 + $0x8] sm:$0xff]
    %v33 = vld [vmem:[%s3] sm:$0xff]
    %v34 = vld [vmem:[%s3 + $0x8] sm:$0xff]
    %v35 = vld [vmem:[%s5] sm:$0x1]
    %v36 = vld [vmem:[%s4] sm:$0xff]
    %v37 = vld [vmem:[%s4 + $0x8] sm:$0xff]
    %v38 = vld [vmem:[%s4 + $0x10] sm:$0xff]
    %v39 = vld [vmem:[%s4 + $0x18] sm:$0xff]
    %v40 = vld [vmem:[%s4 + $0x20] sm:$0xf]
    %vm41 = vcmask 293888
    %v43 = vsel %vm41, %v27, 0
    %v46 = vsel %vm41, %v28, 0
    %vm48 = vcmask 1043456
    %v50 = vsel %vm48, %v40, 0
    %52 = vmatpush.msra.mxu0 0.0
    %53 = vmatpush.msra.mxu0 0.0
    %54 = vmatpush.msra.mxu0 0.0
    %55 = vmatpush.msra.mxu0 0.0
    %56 = vmatpush.msra.mxu0 0.0
    %57 = vmatpush.msra.mxu0 0.0
    %58 = vmatpush.msra.mxu0 0.0
    %59 = vmatpush.msra.mxu0 0.0
    %60 = vmatpush.msra.mxu0 0.0
    %61 = vmatpush.msra.mxu0 0.0
    %62 = vmatpush.msra.mxu0 0.0
    %63 = vmatpush.msra.mxu0 %v50
    %64 = vmatpush.msra.mxu0 %v39
    %65 = vmatpush.msra.mxu0 %v38
    %66 = vmatpush.msra.mxu0 %v37
    %67 = vmatpush.msra.mxu0 %v36
    %68 = vmatmul.f32.gmra.mxu0 %v43
    %v69 = vpop.f32.mrf.mxu0
    %v70 = vadd.f32 0.0, %v69
    %71 = vmatmul.f32.gmra.mxu0 %v46
    %v72 = vpop.f32.mrf.mxu0
    %v73 = vadd.f32 0.0, %v72
    %74 = vdwg.mxu0
    %v76 = vperm.slane %v35, 0
    %v78 = vadd.f32 %v76, %v70
    %v79 = vadd.f32 %v76, %v73
    %vm80 = vcmask 130048
    %v82 = vsel %vm80, %v31, 0
    %v85 = vsel %vm80, %v32, 0
    %87 = vmatpush.msra.mxu0 0.0
    %88 = vmatpush.msra.mxu0 0.0
    %89 = vmatpush.msra.mxu0 0.0
    %90 = vmatpush.msra.mxu0 0.0
    %91 = vmatpush.msra.mxu0 0.0
    %92 = vmatpush.msra.mxu0 0.0
    %93 = vmatpush.msra.mxu0 0.0
    %94 = vmatpush.msra.mxu0 0.0
    %95 = vmatpush.msra.mxu0 0.0
    %96 = vmatpush.msra.mxu0 0.0
    %97 = vmatpush.msra.mxu0 0.0
    %98 = vmatpush.msra.mxu0 0.0
    %99 = vmatpush.msra.mxu0 0.0
    %100 = vmatpush.msra.mxu0 0.0
    %101 = vmatpush.msra.mxu0 %v28
    %102 = vmatpush.msra.mxu0 %v27
    %103 = vmatmul.f32.gmra.mxu0 %v82
    %v104 = vpop.f32.mrf.mxu0
    %v105 = vadd.f32 0.0, %v104
    %106 = vmatmul.f32.gmra.mxu0 %v85
    %v107 = vpop.f32.mrf.mxu0
    %v108 = vadd.f32 0.0, %v107
    %109 = vdwg.mxu0
    %v111 = vsel %vm80, %v33, 0
    %v114 = vsel %vm80, %v34, 0
    %116 = vmatpush.msra.mxu0 0.0
    %117 = vmatpush.msra.mxu0 0.0
    %118 = vmatpush.msra.mxu0 0.0
    %119 = vmatpush.msra.mxu0 0.0
    %120 = vmatpush.msra.mxu0 0.0
    %121 = vmatpush.msra.mxu0 0.0
    %122 = vmatpush.msra.mxu0 0.0
    %123 = vmatpush.msra.mxu0 0.0
    %124 = vmatpush.msra.mxu0 0.0
    %125 = vmatpush.msra.mxu0 0.0
    %126 = vmatpush.msra.mxu0 0.0
    %127 = vmatpush.msra.mxu0 0.0
    %128 = vmatpush.msra.mxu0 0.0
    %129 = vmatpush.msra.mxu0 0.0
    %130 = vmatpush.msra.mxu0 %v28
    %131 = vmatpush.msra.mxu0 %v27
    %132 = vmatmul.f32.gmra.mxu0 %v111
    %v133 = vpop.f32.mrf.mxu0
    %v134 = vadd.f32 0.0, %v133
    %135 = vmatmul.f32.gmra.mxu0 %v114
    %v136 = vpop.f32.mrf.mxu0
    %v137 = vadd.f32 0.0, %v136
    %138 = vdwg.mxu0
    %s139 = scalar_lea.vmem %s4, 40
    %v140 = vld [vmem:[%s139] sm:$0xff]
    %v141 = vld [vmem:[%s139 + $0x8] sm:$0xff]
    %v142 = vld [vmem:[%s139 + $0x10] sm:$0xff]
    %v143 = vld [vmem:[%s139 + $0x18] sm:$0xff]
    %v144 = vld [vmem:[%s139 + $0x20] sm:$0xf]
    %v146 = vsel %vm41, %v105, 0
    %v149 = vsel %vm41, %v108, 0
    %v152 = vsel %vm48, %v144, 0
    %154 = vmatpush.msra.mxu0 0.0
    %155 = vmatpush.msra.mxu0 0.0
    %156 = vmatpush.msra.mxu0 0.0
    %157 = vmatpush.msra.mxu0 0.0
    %158 = vmatpush.msra.mxu0 0.0
    %159 = vmatpush.msra.mxu0 0.0
    %160 = vmatpush.msra.mxu0 0.0
    %161 = vmatpush.msra.mxu0 0.0
    %162 = vmatpush.msra.mxu0 0.0
    %163 = vmatpush.msra.mxu0 0.0
    %164 = vmatpush.msra.mxu0 0.0
    %165 = vmatpush.msra.mxu0 %v152
    %166 = vmatpush.msra.mxu0 %v143
    %167 = vmatpush.msra.mxu0 %v142
    %168 = vmatpush.msra.mxu0 %v141
    %169 = vmatpush.msra.mxu0 %v140
    %170 = vmatmul.f32.gmra.mxu0 %v146
    %v171 = vpop.f32.mrf.mxu0
    %v172 = vadd.f32 0.0, %v171
    %173 = vmatmul.f32.gmra.mxu0 %v149
    %v174 = vpop.f32.mrf.mxu0
    %v175 = vadd.f32 0.0, %v174
    %176 = vdwg.mxu0
    %v177 = vadd.f32 %v78, %v172
    %v178 = vadd.f32 %v79, %v175
    %s179 = scalar_lea.vmem %s4, 80
    %v180 = vld [vmem:[%s179] sm:$0xff]
    %v181 = vld [vmem:[%s179 + $0x8] sm:$0xff]
    %v182 = vld [vmem:[%s179 + $0x10] sm:$0xff]
    %v183 = vld [vmem:[%s179 + $0x18] sm:$0xff]
    %v184 = vld [vmem:[%s179 + $0x20] sm:$0xf]
    %v186 = vsel %vm41, %v134, 0
    %v189 = vsel %vm41, %v137, 0
    %v192 = vsel %vm48, %v184, 0
    %194 = vmatpush.msra.mxu0 0.0
    %195 = vmatpush.msra.mxu0 0.0
    %196 = vmatpush.msra.mxu0 0.0
    %197 = vmatpush.msra.mxu0 0.0
    %198 = vmatpush.msra.mxu0 0.0
    %199 = vmatpush.msra.mxu0 0.0
    %200 = vmatpush.msra.mxu0 0.0
    %201 = vmatpush.msra.mxu0 0.0
    %202 = vmatpush.msra.mxu0 0.0
    %203 = vmatpush.msra.mxu0 0.0
    %204 = vmatpush.msra.mxu0 0.0
    %205 = vmatpush.msra.mxu0 %v192
    %206 = vmatpush.msra.mxu0 %v183
    %207 = vmatpush.msra.mxu0 %v182
    %208 = vmatpush.msra.mxu0 %v181
    %209 = vmatpush.msra.mxu0 %v180
    %210 = vmatmul.f32.gmra.mxu0 %v186
    %v211 = vpop.f32.mrf.mxu0
    %v212 = vadd.f32 0.0, %v211
    %213 = vmatmul.f32.gmra.mxu0 %v189
    %v214 = vpop.f32.mrf.mxu0
    %v215 = vadd.f32 0.0, %v214
    %216 = vdwg.mxu0
    %v217 = vadd.f32 %v177, %v212
    %v218 = vadd.f32 %v178, %v215
    %219 = vmatpush.msra.mxu0 0.0
    %220 = vmatpush.msra.mxu0 0.0
    %221 = vmatpush.msra.mxu0 0.0
    %222 = vmatpush.msra.mxu0 0.0
    %223 = vmatpush.msra.mxu0 0.0
    %224 = vmatpush.msra.mxu0 0.0
    %225 = vmatpush.msra.mxu0 0.0
    %226 = vmatpush.msra.mxu0 0.0
    %227 = vmatpush.msra.mxu0 0.0
    %228 = vmatpush.msra.mxu0 0.0
    %229 = vmatpush.msra.mxu0 0.0
    %230 = vmatpush.msra.mxu0 0.0
    %231 = vmatpush.msra.mxu0 0.0
    %232 = vmatpush.msra.mxu0 0.0
    %233 = vmatpush.msra.mxu0 %v108
    %234 = vmatpush.msra.mxu0 %v105
    %235 = vmatmul.f32.gmra.mxu0 %v82
    %v236 = vpop.f32.mrf.mxu0
    %v237 = vadd.f32 0.0, %v236
    %238 = vmatmul.f32.gmra.mxu0 %v85
    %v239 = vpop.f32.mrf.mxu0
    %v240 = vadd.f32 0.0, %v239
    %241 = vdwg.mxu0
    %v242 = vmul.f32 %v237, 2.0
    %v243 = vmul.f32 %v240, 2.0
    %v244 = vsub.f32 %v242, %v27
    %v245 = vsub.f32 %v243, %v28
    %246 = vmatpush.msra.mxu0 0.0
    %247 = vmatpush.msra.mxu0 0.0
    %248 = vmatpush.msra.mxu0 0.0
    %249 = vmatpush.msra.mxu0 0.0
    %250 = vmatpush.msra.mxu0 0.0
    %251 = vmatpush.msra.mxu0 0.0
    %252 = vmatpush.msra.mxu0 0.0
    %253 = vmatpush.msra.mxu0 0.0
    %254 = vmatpush.msra.mxu0 0.0
    %255 = vmatpush.msra.mxu0 0.0
    %256 = vmatpush.msra.mxu0 0.0
    %257 = vmatpush.msra.mxu0 0.0
    %258 = vmatpush.msra.mxu0 0.0
    %259 = vmatpush.msra.mxu0 0.0
    %260 = vmatpush.msra.mxu0 %v137
    %261 = vmatpush.msra.mxu0 %v134
    %262 = vmatmul.f32.gmra.mxu0 %v111
    %v263 = vpop.f32.mrf.mxu0
    %v264 = vadd.f32 0.0, %v263
    %265 = vmatmul.f32.gmra.mxu0 %v114
    %v266 = vpop.f32.mrf.mxu0
    %v267 = vadd.f32 0.0, %v266
    %268 = vdwg.mxu0
    %v269 = vmul.f32 %v264, 2.0
    %v270 = vmul.f32 %v267, 2.0
    %v271 = vsub.f32 %v269, %v27
    %v272 = vsub.f32 %v270, %v28
    %s273 = scalar_lea.vmem %s4, 120
    %v274 = vld [vmem:[%s273] sm:$0xff]
    %v275 = vld [vmem:[%s273 + $0x8] sm:$0xff]
    %v276 = vld [vmem:[%s273 + $0x10] sm:$0xff]
    %v277 = vld [vmem:[%s273 + $0x18] sm:$0xff]
    %v278 = vld [vmem:[%s273 + $0x20] sm:$0xf]
    %v280 = vsel %vm41, %v244, 0
    %v283 = vsel %vm41, %v245, 0
    %v286 = vsel %vm48, %v278, 0
    %288 = vmatpush.msra.mxu0 0.0
    %289 = vmatpush.msra.mxu0 0.0
    %290 = vmatpush.msra.mxu0 0.0
    %291 = vmatpush.msra.mxu0 0.0
    %292 = vmatpush.msra.mxu0 0.0
    %293 = vmatpush.msra.mxu0 0.0
    %294 = vmatpush.msra.mxu0 0.0
    %295 = vmatpush.msra.mxu0 0.0
    %296 = vmatpush.msra.mxu0 0.0
    %297 = vmatpush.msra.mxu0 0.0
    %298 = vmatpush.msra.mxu0 0.0
    %299 = vmatpush.msra.mxu0 %v286
    %300 = vmatpush.msra.mxu0 %v277
    %301 = vmatpush.msra.mxu0 %v276
    %302 = vmatpush.msra.mxu0 %v275
    %303 = vmatpush.msra.mxu0 %v274
    %304 = vmatmul.f32.gmra.mxu0 %v280
    %v305 = vpop.f32.mrf.mxu0
    %v306 = vadd.f32 0.0, %v305
    %307 = vmatmul.f32.gmra.mxu0 %v283
    %v308 = vpop.f32.mrf.mxu0
    %v309 = vadd.f32 0.0, %v308
    %310 = vdwg.mxu0
    %v311 = vadd.f32 %v217, %v306
    %v312 = vadd.f32 %v218, %v309
    %s313 = scalar_lea.vmem %s4, 160
    %v314 = vld [vmem:[%s313] sm:$0xff]
    %v315 = vld [vmem:[%s313 + $0x8] sm:$0xff]
    %v316 = vld [vmem:[%s313 + $0x10] sm:$0xff]
    %v317 = vld [vmem:[%s313 + $0x18] sm:$0xff]
    %v318 = vld [vmem:[%s313 + $0x20] sm:$0xf]
    %v320 = vsel %vm41, %v271, 0
    %v323 = vsel %vm41, %v272, 0
    %v326 = vsel %vm48, %v318, 0
    %328 = vmatpush.msra.mxu0 0.0
    %329 = vmatpush.msra.mxu0 0.0
    %330 = vmatpush.msra.mxu0 0.0
    %331 = vmatpush.msra.mxu0 0.0
    %332 = vmatpush.msra.mxu0 0.0
    %333 = vmatpush.msra.mxu0 0.0
    %334 = vmatpush.msra.mxu0 0.0
    %335 = vmatpush.msra.mxu0 0.0
    %336 = vmatpush.msra.mxu0 0.0
    %337 = vmatpush.msra.mxu0 0.0
    %338 = vmatpush.msra.mxu0 0.0
    %339 = vmatpush.msra.mxu0 %v326
    %340 = vmatpush.msra.mxu0 %v317
    %341 = vmatpush.msra.mxu0 %v316
    %342 = vmatpush.msra.mxu0 %v315
    %343 = vmatpush.msra.mxu0 %v314
    %344 = vmatmul.f32.gmra.mxu0 %v320
    %v345 = vpop.f32.mrf.mxu0
    %v346 = vadd.f32 0.0, %v345
    %347 = vmatmul.f32.gmra.mxu0 %v323
    %v348 = vpop.f32.mrf.mxu0
    %v349 = vadd.f32 0.0, %v348
    %350 = vdwg.mxu0
    %v351 = vadd.f32 %v311, %v346
    %v352 = vadd.f32 %v312, %v349
    %v353 = vxor.u32 %v351, 2147483648
    %v354 = vxor.u32 %v352, 2147483648
    %v355 = vmul.f32 %v353, 1.442695
    %v356 = vpow.pop %v355
    %v357 = vmul.f32 %v354, 1.442695
    %v358 = vpow.pop %v357
    %v359 = vadd.f32 %v356, 1.0
    %v360 = vadd.f32 %v358, 1.0
    %v361 = vrcp.pop %v359
    %v362 = vmul.f32 %v359, %v361
    %v363 = vsub.f32 1.0, %v362
    %v364 = vmul.f32 %v361, %v363
    %v365 = vadd.f32 %v361, %v364
    %vm366 = vweird.f32 %v359
    %vm367 = vweird.f32 %v361
    %vm368 = vmor %vm366, %vm367
    %v369 = vsel %vm368, %v361, %v365
    %v370 = vand.u32 2147483647, %v359
    %vm371 = vcmp.eq.f32.partialorder %v370, 8.507059e+37
    %v372 = vand.u32 %v359, 2147483648
    %v373 = vor.u32 1.1754944e-38, %v372
    %v374 = vsel %vm371, %v373, %v369
    %v375 = vmul.f32 1.0, %v374
    %v376 = vrcp.pop %v360
    %v377 = vmul.f32 %v360, %v376
    %v378 = vsub.f32 1.0, %v377
    %v379 = vmul.f32 %v376, %v378
    %v380 = vadd.f32 %v376, %v379
    %vm381 = vweird.f32 %v360
    %vm382 = vweird.f32 %v376
    %vm383 = vmor %vm381, %vm382
    %v384 = vsel %vm383, %v376, %v380
    %v385 = vand.u32 2147483647, %v360
    %vm386 = vcmp.eq.f32.partialorder %v385, 8.507059e+37
    %v387 = vand.u32 %v360, 2147483648
    %v388 = vor.u32 1.1754944e-38, %v387
    %v389 = vsel %vm386, %v388, %v384
    %v390 = vmul.f32 1.0, %v389
    %393 = vrot.lane.b32.xlu0 %v375, 96
    %v394 = vpop.permute.xlu0 %393
    %395 = vrot.lane.b32.xlu0 %v390, 96
    %v396 = vpop.permute.xlu0 %395
    %v399 = vmul.f32 %v29, %v394
    %v400 = vmul.f32 %v30, %v396
    %v401 = vld [vmem:[%s6] sm:$0xff]
    %v402 = vld [vmem:[%s6 + $0x8] sm:$0xff]
    %v403 = vld [vmem:[%s6 + $0x10] sm:$0xff]
    %v404 = vld [vmem:[%s6 + $0x18] sm:$0xff]
    %vm405 = vcmask 261120
    %v407 = vsel %vm405, %v399, 0
    %v410 = vsel %vm405, %v400, 0
    %412 = vmatpush.msra.mxu0 0.0
    %413 = vmatpush.msra.mxu0 0.0
    %414 = vmatpush.msra.mxu0 0.0
    %415 = vmatpush.msra.mxu0 0.0
    %416 = vmatpush.msra.mxu0 0.0
    %417 = vmatpush.msra.mxu0 0.0
    %418 = vmatpush.msra.mxu0 0.0
    %419 = vmatpush.msra.mxu0 0.0
    %420 = vmatpush.msra.mxu0 0.0
    %421 = vmatpush.msra.mxu0 0.0
    %422 = vmatpush.msra.mxu0 0.0
    %423 = vmatpush.msra.mxu0 0.0
    %424 = vmatpush.msra.mxu0 %v404
    %425 = vmatpush.msra.mxu0 %v403
    %426 = vmatpush.msra.mxu0 %v402
    %427 = vmatpush.msra.mxu0 %v401
    %428 = vmatmul.f32.gmra.mxu0 %v407
    %v429 = vpop.f32.mrf.mxu0
    %v430 = vadd.f32 0.0, %v429
    %431 = vmatmul.f32.gmra.mxu0 %v410
    %v432 = vpop.f32.mrf.mxu0
    %v433 = vadd.f32 0.0, %v432
    %434 = vdwg.mxu0
    %437 = vrot.lane.b32.xlu0 %v430, 64
    %v438 = vpop.permute.xlu0 %437
    %439 = vrot.lane.b32.xlu0 %v433, 64
    %v440 = vpop.permute.xlu0 %439
    %v443 = vadd.f32 %v351, %v438
    %v444 = vadd.f32 %v352, %v440
    %445 = vmatpush.msra.mxu0 0.0
    %446 = vmatpush.msra.mxu0 0.0
    %447 = vmatpush.msra.mxu0 0.0
    %448 = vmatpush.msra.mxu0 0.0
    %449 = vmatpush.msra.mxu0 0.0
    %450 = vmatpush.msra.mxu0 0.0
    %451 = vmatpush.msra.mxu0 0.0
    %452 = vmatpush.msra.mxu0 0.0
    %453 = vmatpush.msra.mxu0 0.0
    %454 = vmatpush.msra.mxu0 0.0
    %455 = vmatpush.msra.mxu0 0.0
    %456 = vmatpush.msra.mxu0 0.0
    %457 = vmatpush.msra.mxu0 0.0
    %458 = vmatpush.msra.mxu0 0.0
    %459 = vmatpush.msra.mxu0 %v400
    %460 = vmatpush.msra.mxu0 %v399
    %461 = vmatmul.f32.gmra.mxu0 %v82
    %v462 = vpop.f32.mrf.mxu0
    %v463 = vadd.f32 0.0, %v462
    %464 = vmatmul.f32.gmra.mxu0 %v85
    %v465 = vpop.f32.mrf.mxu0
    %v466 = vadd.f32 0.0, %v465
    %467 = vdwg.mxu0
    %468 = vmatpush.msra.mxu0 0.0
    %469 = vmatpush.msra.mxu0 0.0
    %470 = vmatpush.msra.mxu0 0.0
    %471 = vmatpush.msra.mxu0 0.0
    %472 = vmatpush.msra.mxu0 0.0
    %473 = vmatpush.msra.mxu0 0.0
    %474 = vmatpush.msra.mxu0 0.0
    %475 = vmatpush.msra.mxu0 0.0
    %476 = vmatpush.msra.mxu0 0.0
    %477 = vmatpush.msra.mxu0 0.0
    %478 = vmatpush.msra.mxu0 0.0
    %479 = vmatpush.msra.mxu0 0.0
    %480 = vmatpush.msra.mxu0 0.0
    %481 = vmatpush.msra.mxu0 0.0
    %482 = vmatpush.msra.mxu0 %v400
    %483 = vmatpush.msra.mxu0 %v399
    %484 = vmatmul.f32.gmra.mxu0 %v111
    %v485 = vpop.f32.mrf.mxu0
    %v486 = vadd.f32 0.0, %v485
    %487 = vmatmul.f32.gmra.mxu0 %v114
    %v488 = vpop.f32.mrf.mxu0
    %v489 = vadd.f32 0.0, %v488
    %490 = vdwg.mxu0
    %s491 = scalar_lea.vmem %s6, 32
    %v492 = vld [vmem:[%s491] sm:$0xff]
    %v493 = vld [vmem:[%s491 + $0x8] sm:$0xff]
    %v494 = vld [vmem:[%s491 + $0x10] sm:$0xff]
    %v495 = vld [vmem:[%s491 + $0x18] sm:$0xff]
    %v497 = vsel %vm405, %v463, 0
    %v500 = vsel %vm405, %v466, 0
    %502 = vmatpush.msra.mxu0 0.0
    %503 = vmatpush.msra.mxu0 0.0
    %504 = vmatpush.msra.mxu0 0.0
    %505 = vmatpush.msra.mxu0 0.0
    %506 = vmatpush.msra.mxu0 0.0
    %507 = vmatpush.msra.mxu0 0.0
    %508 = vmatpush.msra.mxu0 0.0
    %509 = vmatpush.msra.mxu0 0.0
    %510 = vmatpush.msra.mxu0 0.0
    %511 = vmatpush.msra.mxu0 0.0
    %512 = vmatpush.msra.mxu0 0.0
    %513 = vmatpush.msra.mxu0 0.0
    %514 = vmatpush.msra.mxu0 %v495
    %515 = vmatpush.msra.mxu0 %v494
    %516 = vmatpush.msra.mxu0 %v493
    %517 = vmatpush.msra.mxu0 %v492
    %518 = vmatmul.f32.gmra.mxu0 %v497
    %v519 = vpop.f32.mrf.mxu0
    %v520 = vadd.f32 0.0, %v519
    %521 = vmatmul.f32.gmra.mxu0 %v500
    %v522 = vpop.f32.mrf.mxu0
    %v523 = vadd.f32 0.0, %v522
    %524 = vdwg.mxu0
    %527 = vrot.lane.b32.xlu0 %v520, 64
    %v528 = vpop.permute.xlu0 %527
    %529 = vrot.lane.b32.xlu0 %v523, 64
    %v530 = vpop.permute.xlu0 %529
    %v533 = vadd.f32 %v443, %v528
    %v534 = vadd.f32 %v444, %v530
    %s535 = scalar_lea.vmem %s6, 64
    %v536 = vld [vmem:[%s535] sm:$0xff]
    %v537 = vld [vmem:[%s535 + $0x8] sm:$0xff]
    %v538 = vld [vmem:[%s535 + $0x10] sm:$0xff]
    %v539 = vld [vmem:[%s535 + $0x18] sm:$0xff]
    %v541 = vsel %vm405, %v486, 0
    %v544 = vsel %vm405, %v489, 0
    %546 = vmatpush.msra.mxu0 0.0
    %547 = vmatpush.msra.mxu0 0.0
    %548 = vmatpush.msra.mxu0 0.0
    %549 = vmatpush.msra.mxu0 0.0
    %550 = vmatpush.msra.mxu0 0.0
    %551 = vmatpush.msra.mxu0 0.0
    %552 = vmatpush.msra.mxu0 0.0
    %553 = vmatpush.msra.mxu0 0.0
    %554 = vmatpush.msra.mxu0 0.0
    %555 = vmatpush.msra.mxu0 0.0
    %556 = vmatpush.msra.mxu0 0.0
    %557 = vmatpush.msra.mxu0 0.0
    %558 = vmatpush.msra.mxu0 %v539
    %559 = vmatpush.msra.mxu0 %v538
    %560 = vmatpush.msra.mxu0 %v537
    %561 = vmatpush.msra.mxu0 %v536
    %562 = vmatmul.f32.gmra.mxu0 %v541
    %v563 = vpop.f32.mrf.mxu0
    %v564 = vadd.f32 0.0, %v563
    %565 = vmatmul.f32.gmra.mxu0 %v544
    %v566 = vpop.f32.mrf.mxu0
    %v567 = vadd.f32 0.0, %v566
    %568 = vdwg.mxu0
    %571 = vrot.lane.b32.xlu0 %v564, 64
    %v572 = vpop.permute.xlu0 %571
    %573 = vrot.lane.b32.xlu0 %v567, 64
    %v574 = vpop.permute.xlu0 %573
    %v577 = vadd.f32 %v533, %v572
    %v578 = vadd.f32 %v534, %v574
    %579 = vmatpush.msra.mxu0 0.0
    %580 = vmatpush.msra.mxu0 0.0
    %581 = vmatpush.msra.mxu0 0.0
    %582 = vmatpush.msra.mxu0 0.0
    %583 = vmatpush.msra.mxu0 0.0
    %584 = vmatpush.msra.mxu0 0.0
    %585 = vmatpush.msra.mxu0 0.0
    %586 = vmatpush.msra.mxu0 0.0
    %587 = vmatpush.msra.mxu0 0.0
    %588 = vmatpush.msra.mxu0 0.0
    %589 = vmatpush.msra.mxu0 0.0
    %590 = vmatpush.msra.mxu0 0.0
    %591 = vmatpush.msra.mxu0 0.0
    %592 = vmatpush.msra.mxu0 0.0
    %593 = vmatpush.msra.mxu0 %v466
    %594 = vmatpush.msra.mxu0 %v463
    %595 = vmatmul.f32.gmra.mxu0 %v82
    %v596 = vpop.f32.mrf.mxu0
    %v597 = vadd.f32 0.0, %v596
    %598 = vmatmul.f32.gmra.mxu0 %v85
    %v599 = vpop.f32.mrf.mxu0
    %v600 = vadd.f32 0.0, %v599
    %601 = vdwg.mxu0
    %v602 = vmul.f32 %v597, 2.0
    %v603 = vmul.f32 %v600, 2.0
    %v604 = vsub.f32 %v602, %v399
    %v605 = vsub.f32 %v603, %v400
    %606 = vmatpush.msra.mxu0 0.0
    %607 = vmatpush.msra.mxu0 0.0
    %608 = vmatpush.msra.mxu0 0.0
    %609 = vmatpush.msra.mxu0 0.0
    %610 = vmatpush.msra.mxu0 0.0
    %611 = vmatpush.msra.mxu0 0.0
    %612 = vmatpush.msra.mxu0 0.0
    %613 = vmatpush.msra.mxu0 0.0
    %614 = vmatpush.msra.mxu0 0.0
    %615 = vmatpush.msra.mxu0 0.0
    %616 = vmatpush.msra.mxu0 0.0
    %617 = vmatpush.msra.mxu0 0.0
    %618 = vmatpush.msra.mxu0 0.0
    %619 = vmatpush.msra.mxu0 0.0
    %620 = vmatpush.msra.mxu0 %v489
    %621 = vmatpush.msra.mxu0 %v486
    %622 = vmatmul.f32.gmra.mxu0 %v111
    %v623 = vpop.f32.mrf.mxu0
    %v624 = vadd.f32 0.0, %v623
    %625 = vmatmul.f32.gmra.mxu0 %v114
    %v626 = vpop.f32.mrf.mxu0
    %v627 = vadd.f32 0.0, %v626
    %628 = vdwg.mxu0
    %v629 = vmul.f32 %v624, 2.0
    %v630 = vmul.f32 %v627, 2.0
    %v631 = vsub.f32 %v629, %v399
    %v632 = vsub.f32 %v630, %v400
    %s633 = scalar_lea.vmem %s6, 96
    %v634 = vld [vmem:[%s633] sm:$0xff]
    %v635 = vld [vmem:[%s633 + $0x8] sm:$0xff]
    %v636 = vld [vmem:[%s633 + $0x10] sm:$0xff]
    %v637 = vld [vmem:[%s633 + $0x18] sm:$0xff]
    %v639 = vsel %vm405, %v604, 0
    %v642 = vsel %vm405, %v605, 0
    %644 = vmatpush.msra.mxu0 0.0
    %645 = vmatpush.msra.mxu0 0.0
    %646 = vmatpush.msra.mxu0 0.0
    %647 = vmatpush.msra.mxu0 0.0
    %648 = vmatpush.msra.mxu0 0.0
    %649 = vmatpush.msra.mxu0 0.0
    %650 = vmatpush.msra.mxu0 0.0
    %651 = vmatpush.msra.mxu0 0.0
    %652 = vmatpush.msra.mxu0 0.0
    %653 = vmatpush.msra.mxu0 0.0
    %654 = vmatpush.msra.mxu0 0.0
    %655 = vmatpush.msra.mxu0 0.0
    %656 = vmatpush.msra.mxu0 %v637
    %657 = vmatpush.msra.mxu0 %v636
    %658 = vmatpush.msra.mxu0 %v635
    %659 = vmatpush.msra.mxu0 %v634
    %660 = vmatmul.f32.gmra.mxu0 %v639
    %v661 = vpop.f32.mrf.mxu0
    %v662 = vadd.f32 0.0, %v661
    %663 = vmatmul.f32.gmra.mxu0 %v642
    %v664 = vpop.f32.mrf.mxu0
    %v665 = vadd.f32 0.0, %v664
    %666 = vdwg.mxu0
    %669 = vrot.lane.b32.xlu0 %v662, 64
    %v670 = vpop.permute.xlu0 %669
    %671 = vrot.lane.b32.xlu0 %v665, 64
    %v672 = vpop.permute.xlu0 %671
    %v675 = vadd.f32 %v577, %v670
    %v676 = vadd.f32 %v578, %v672
    %s677 = scalar_lea.vmem %s6, 128
    %v678 = vld [vmem:[%s677] sm:$0xff]
    %v679 = vld [vmem:[%s677 + $0x8] sm:$0xff]
    %v680 = vld [vmem:[%s677 + $0x10] sm:$0xff]
    %v681 = vld [vmem:[%s677 + $0x18] sm:$0xff]
    %v683 = vsel %vm405, %v631, 0
    %v686 = vsel %vm405, %v632, 0
    %688 = vmatpush.msra.mxu0 0.0
    %689 = vmatpush.msra.mxu0 0.0
    %690 = vmatpush.msra.mxu0 0.0
    %691 = vmatpush.msra.mxu0 0.0
    %692 = vmatpush.msra.mxu0 0.0
    %693 = vmatpush.msra.mxu0 0.0
    %694 = vmatpush.msra.mxu0 0.0
    %695 = vmatpush.msra.mxu0 0.0
    %696 = vmatpush.msra.mxu0 0.0
    %697 = vmatpush.msra.mxu0 0.0
    %698 = vmatpush.msra.mxu0 0.0
    %699 = vmatpush.msra.mxu0 0.0
    %700 = vmatpush.msra.mxu0 %v681
    %701 = vmatpush.msra.mxu0 %v680
    %702 = vmatpush.msra.mxu0 %v679
    %703 = vmatpush.msra.mxu0 %v678
    %704 = vmatmul.f32.gmra.mxu0 %v683
    %v705 = vpop.f32.mrf.mxu0
    %v706 = vadd.f32 0.0, %v705
    %707 = vmatmul.f32.gmra.mxu0 %v686
    %v708 = vpop.f32.mrf.mxu0
    %v709 = vadd.f32 0.0, %v708
    %710 = vdwg.mxu0
    %713 = vrot.lane.b32.xlu0 %v706, 64
    %v714 = vpop.permute.xlu0 %713
    %715 = vrot.lane.b32.xlu0 %v709, 64
    %v716 = vpop.permute.xlu0 %715
    %v719 = vadd.f32 %v675, %v714
    %v720 = vadd.f32 %v676, %v716
    %v721 = vtanh.pop %v719
    %v722 = vtanh.pop %v720
    %725 = vrot.lane.b32.xlu0 %v721, 64
    %v726 = vpop.permute.xlu0 %725
    %727 = vrot.lane.b32.xlu0 %v722, 64
    %v728 = vpop.permute.xlu0 %727
    %v731 = vmul.f32 %v375, %v726
    %v732 = vmul.f32 %v390, %v728
    %v733 = vsub.f32 1.0, %v375
    %v734 = vsub.f32 1.0, %v390
    %v735 = vmul.f32 %v733, %v29
    %v736 = vmul.f32 %v734, %v30
    %v737 = vadd.f32 %v731, %v735
    %v738 = vadd.f32 %v732, %v736
    %739 = vst.msk [vmem:[#allocation2] sm:$0xff] %vm405, %v737
    %740 = vst.msk [vmem:[#allocation2 + $0x8] sm:$0xff] %vm405, %v738
    // Predicated region
    $region30: #{dcrnn_hidden_forward.1} parent=1 // pred_check
      _
    $region31: #{dcrnn_hidden_forward.1} parent=1 // pred_check_branch
      %742 = sbr.rel (0) target = $region33
    $region32: #{dcrnn_hidden_forward.1} parent=1 // pred_region
      %744 = vsyncadd [#allocation3], 0
      %s745 = sshll.u32 [#allocation2], 4
      %s746 = int_to_ptr.vmem [resolvable:$true] %s745
      %s747 = sshll.u32 %s7, 4
      %s748 = int_to_ptr.hbm [resolvable:$true] %s747
      %753 = dma.vmem_to_hbm [thread:$0]  %s746, 256, %s748, [#allocation3], 128, 128, 8
    $region33: #{dcrnn_hidden_forward.1} parent=1 // pred_fallthru
      _
    // Predicated region
    $region34: #{dcrnn_hidden_forward.1} parent=1 // pred_check
      _
    $region35: #{dcrnn_hidden_forward.1} parent=1 // pred_check_branch
      %755 = sbr.rel (0) target = $region37
    $region36: #{dcrnn_hidden_forward.1} parent=1 // pred_region
      %757 = dma.done [#allocation3], 256
    $region37: #{dcrnn_hidden_forward.1} parent=1 // pred_fallthru
      _
    %758 = vsyncpa [#allocation3], 1

</llo_original>
